<compile_context>
chip_gen: v6e
topology: v6e:2x2x1
jax: 0.10.0
libtpu: 0.0.40
codegen_flags: <defaults>
</compile_context>

<pallas_src>
import jax
import jax.numpy as jnp
from jax.experimental import pallas as pl
from jax.experimental.pallas import tpu as pltpu


# ----------------------------------------------------------------------------
# Kernel: fused linear  out = x @ W + b   (== nn.LazyLinear forward)
# ----------------------------------------------------------------------------
def _linear_kernel(x_ref, w_ref, b_ref, o_ref):
    # x_ref: (B, F)   attribute tensor (attributes + center coordinates)
    # w_ref: (F, H)   weight, stored (in, out) i.e. torch Linear.weight.T
    # b_ref: (1, H)   bias row (broadcasts over B)
    # o_ref: (B, H)
    o_ref[...] = (
        jnp.dot(x_ref[...], w_ref[...], preferred_element_type=jnp.float32)
        + b_ref[...]
    )


def attribute_sender_forward(params, _x, aux_input):
    """AttributeSender.forward(_x, aux_input) -> hidden(attribute_tensor).

    `_x` (the image) is accepted but unused, matching the PyTorch module.
    """
    attr = aux_input["attribute_tensor"]          # (B, F) f32
    w = params["w"]                               # (F, H) f32
    b = params["b"]                               # (1, H) f32 — stored as a row
    B, F = attr.shape
    H = w.shape[1]

    cost = pl.CostEstimate(
        flops=2 * B * F * H,
        transcendentals=0,
        bytes_accessed=4 * (B * F + F * H + H + B * H),
    )

    # No grid: a single kernel invocation on whole-array VMEM blocks.  This
    # avoids all pipeline/prologue scaffolding for an overhead-bound launch.
    vmem = pltpu.MemorySpace.VMEM
    return pl.pallas_call(
        _linear_kernel,
        out_shape=jax.ShapeDtypeStruct((B, H), jnp.float32),
        in_specs=[
            pl.BlockSpec(memory_space=vmem),      # x
            pl.BlockSpec(memory_space=vmem),      # W
            pl.BlockSpec(memory_space=vmem),      # b (1, H)
        ],
        out_specs=pl.BlockSpec(memory_space=vmem),
        cost_estimate=cost,
    )(attr, w, b)


# ----------------------------------------------------------------------------
# Pure-JAX reference for validation.
# ----------------------------------------------------------------------------
def reference_forward(params, _x, aux_input):
    attr = aux_input["attribute_tensor"]
    return attr @ params["w"] + params["b"]


if __name__ == "__main__":
    # Small shapes consistent with the module's forward:
    #  - attribute_tensor: (batch, feat) where feat holds the object
    #    attributes (shape/size/color encodings) + center coordinates.
    #  - image `_x` is present in the signature but unused by forward.
    B = 2
    F = 24                  # attribute features (shape, size, color, coords)
    H = 32                  # sender_hidden
    Cin, Himg, Wimg = 3, 16, 16

    key = jax.random.PRNGKey(0)
    k_w, k_b, k_attr, k_img = jax.random.split(key, 4)

    params = {
        "w": 0.05 * jax.random.normal(k_w, (F, H), jnp.float32),
        # Bias kept as a (1, H) row at init: no per-forward reshape op.
        "b": 0.05 * jax.random.normal(k_b, (1, H), jnp.float32),
    }
    x_image = jax.random.normal(k_img, (B, Cin, Himg, Wimg), jnp.float32)  # unused
    aux_input = {
        "attribute_tensor": jax.random.normal(k_attr, (B, F), jnp.float32),
    }

    out = attribute_sender_forward(params, x_image, aux_input)
    out = jax.block_until_ready(out)

    ref = jax.block_until_ready(reference_forward(params, x_image, aux_input))
    assert out.shape == (B, H), out.shape
    assert jnp.allclose(out, ref, atol=1e-5, rtol=1e-5), \
        float(jnp.max(jnp.abs(out - ref)))

    print("KERNEL_OK")
</pallas_src>

<mosaic_0001>
module attributes {stable_mosaic.version = 11 : i64} {
  func.func @_linear_kernel(%arg0: memref<2x24xf32, #tpu.memory_space<vmem>>, %arg1: memref<24x32xf32, #tpu.memory_space<vmem>>, %arg2: memref<1x32xf32, #tpu.memory_space<vmem>>, %arg3: memref<2x32xf32, #tpu.memory_space<vmem>>) attributes {dimension_semantics = [], scalar_prefetch = 0 : i64, scratch_operands = 0 : i64, tpu.core_type = #tpu.core_type<tc>} {
    %c0 = arith.constant 0 : index
    %c0_0 = arith.constant 0 : index
    %0 = vector.load %arg0[%c0, %c0_0] : memref<2x24xf32, #tpu.memory_space<vmem>>, vector<2x24xf32>
    %c0_1 = arith.constant 0 : index
    %c0_2 = arith.constant 0 : index
    %1 = vector.load %arg1[%c0_1, %c0_2] : memref<24x32xf32, #tpu.memory_space<vmem>>, vector<24x32xf32>
    %cst = arith.constant dense<0.000000e+00> : vector<2x32xf32>
    %2 = tpu.matmul %0, %1, %cst {dimension_numbers = #tpu.dot_dimension_numbers<[1], [0], [0], [1], [0, 0, 1, 1], [], []>} : vector<2x24xf32>, vector<24x32xf32>, vector<2x32xf32> -> vector<2x32xf32>
    %c0_3 = arith.constant 0 : index
    %c0_4 = arith.constant 0 : index
    %3 = vector.load %arg2[%c0_3, %c0_4] : memref<1x32xf32, #tpu.memory_space<vmem>>, vector<1x32xf32>
    %4 = vector.broadcast %3 : vector<1x32xf32> to vector<2x32xf32>
    %5 = arith.addf %2, %4 : vector<2x32xf32>
    %c0_5 = arith.constant 0 : index
    %c0_6 = arith.constant 0 : index
    %6 = vector.load %arg3[%c0_5, %c0_6] : memref<2x32xf32, #tpu.memory_space<vmem>>, vector<2x32xf32>
    tpu.vector_store %arg3[%c0_5, %c0_6], %5 {strides = array<i32>} : memref<2x32xf32, #tpu.memory_space<vmem>>, vector<2x32xf32>,
    return
  }
}

</mosaic_0001>

<llo_original>
// kernel: tpu_custom_call.1
$region0: #{tpu_custom_call.1}
  #allocation0 [shape = 'u32[]', space=smem, size = 0x4, offset = 0x4, fixed_abs, tag = 'smem constant byte address 0x4 - core index']
  #allocation1 [shape = 'u32[144,128]{1,0:T(1,128)}', space=vmem, size = 0x12000, scoped, tag = 'internal scratch']
  %s0 = inlined_call_operand.hbm [shape: f32[2,24], index: 0, kind: input, shape index: {}]
  %s1 = inlined_call_operand.hbm [shape: f32[24,32], index: 1, kind: input, shape index: {}]
  %s2 = inlined_call_operand.vmem [shape: f32[1,32], index: 2, kind: input, shape index: {}]
  %s3 = inlined_call_operand.hbm [shape: f32[2,32], index: 3, kind: output, shape index: {}]
  %s4 = sld [smem:[#allocation0]]
  $region30: #{tpu_custom_call.1} parent=0
    _
  %s6 = ssub.s32 1, %s4
  %s7 = scalar_select 0, %s6, %s4
  $region1: #{tpu_custom_call.1} parent=0
    #allocation2 [shape = 'u8[1024]{0}', space=vmem, size = 0x400, scoped, tag = 'input window, operand 0, single buffered']
    #allocation3 [shape = 's32[1]{0}', space=sflag, size = 0x4, scoped, tag = 'scoped memory for tpu_custom_call.1']
    #allocation4 [shape = 's32[1]{0}', space=sflag, size = 0x4, scoped, tag = 'scoped memory for tpu_custom_call.1']
    #allocation5 [shape = 'u8[12288]{0}', space=vmem, size = 0x3000, scoped, tag = 'input window, operand 1, single buffered']
    #allocation6 [shape = 's32[1]{0}', space=sflag, size = 0x4, scoped, tag = 'scoped memory for tpu_custom_call.1']
    #allocation7 [shape = 'u8[1024]{0}', space=vmem, size = 0x400, scoped, tag = 'output window, operand 0, single buffered']
    %8 = vsyncpa [#allocation3], 0
    %9 = vsyncpa [#allocation6], 0
    %10 = vsyncpa [#allocation4], 0
    // Predicated region
    $region2: #{tpu_custom_call.1} parent=1 // pred_check
      _
    $region3: #{tpu_custom_call.1} parent=1 // pred_check_branch
      %12 = sbr.rel (0) target = $region5
    $region4: #{tpu_custom_call.1} parent=1 // pred_region
      %s14 = ssub.s32 32, 32
      %15 = vsyncadd [#allocation3], %s14
      %s17 = sshll.u32 [#allocation2], 4
      %s18 = int_to_ptr.vmem [resolvable:$true] %s17
      %20 = dma.hbm_to_vmem [thread:$0]  %s0, 32, %s18, [#allocation3]
    $region5: #{tpu_custom_call.1} parent=1 // pred_fallthru
      _
    // Predicated region
    $region6: #{tpu_custom_call.1} parent=1 // pred_check
      _
    $region7: #{tpu_custom_call.1} parent=1 // pred_check_branch
      %22 = sbr.rel (0) target = $region9
    $region8: #{tpu_custom_call.1} parent=1 // pred_region
      %s24 = ssub.s32 384, 384
      %25 = vsyncadd [#allocation6], %s24
      %s26 = sshll.u32 [#allocation5], 4
      %s27 = int_to_ptr.vmem [resolvable:$true] %s26
      %32 = dma.hbm_to_vmem [thread:$0]  %s1, 384, %s27, [#allocation6], 128, 128, 8
    $region9: #{tpu_custom_call.1} parent=1 // pred_fallthru
      _
    // Predicated region
    $region10: #{tpu_custom_call.1} parent=1 // pred_check
      _
    $region11: #{tpu_custom_call.1} parent=1 // pred_check_branch
      %34 = sbr.rel (0) target = $region13
    $region12: #{tpu_custom_call.1} parent=1 // pred_region
      _
    $region13: #{tpu_custom_call.1} parent=1 // pred_fallthru
      _
    // Predicated region
    $region14: #{tpu_custom_call.1} parent=1 // pred_check
      _
    $region15: #{tpu_custom_call.1} parent=1 // pred_check_branch
      %36 = sbr.rel (0) target = $region17
    $region16: #{tpu_custom_call.1} parent=1 // pred_region
      %37 = dma.done [#allocation3], 32
    $region17: #{tpu_custom_call.1} parent=1 // pred_fallthru
      _
    // Predicated region
    $region18: #{tpu_custom_call.1} parent=1 // pred_check
      _
    $region19: #{tpu_custom_call.1} parent=1 // pred_check_branch
      %39 = sbr.rel (0) target = $region21
    $region20: #{tpu_custom_call.1} parent=1 // pred_region
      %40 = dma.done [#allocation6], 384
    $region21: #{tpu_custom_call.1} parent=1 // pred_fallthru
      _
    %v41 = vld [vmem:[#allocation2] sm:$0x3]
    %v42 = vld [vmem:[#allocation5] sm:$0xff]
    %v43 = vld [vmem:[#allocation5 + $0x8] sm:$0xff]
    %v44 = vld [vmem:[#allocation5 + $0x10] sm:$0xff]
    %v45 = vld [vmem:[%s2] sm:$0x1]
    %v47 = vlaneseq
    %v48 = vshrl.u32 %v47, 7
    %v49 = vsub.s32 0, %v48
    %v50 = vrot.slane %v45, %v49
    %vm52 = vcmask 195584
    %v54 = vsel %vm52, %v41, 0
    %56 = vmatprep.subr.mxu0 0.0
    %57 = vmatpush1.msra.mxu0 0.0
    %58 = vmatprep.subr.mxu0 0.0
    %59 = vmatpush1.msra.mxu0 0.0
    %60 = vmatprep.subr.mxu0 0.0
    %61 = vmatpush1.msra.mxu0 0.0
    %62 = vmatprep.subr.mxu0 0.0
    %63 = vmatpush1.msra.mxu0 0.0
    %64 = vmatprep.subr.mxu0 0.0
    %65 = vmatpush1.msra.mxu0 0.0
    %66 = vmatprep.subr.mxu0 0.0
    %67 = vmatpush1.msra.mxu0 0.0
    %68 = vmatprep.subr.mxu0 0.0
    %69 = vmatpush1.msra.mxu0 0.0
    %70 = vmatprep.subr.mxu0 0.0
    %71 = vmatpush1.msra.mxu0 0.0
    %72 = vmatprep.subr.mxu0 0.0
    %73 = vmatpush1.msra.mxu0 0.0
    %74 = vmatprep.subr.mxu0 0.0
    %75 = vmatpush1.msra.mxu0 0.0
    %76 = vmatprep.subr.mxu0 0.0
    %77 = vmatpush1.msra.mxu0 0.0
    %78 = vmatprep.subr.mxu0 0.0
    %79 = vmatpush1.msra.mxu0 0.0
    %80 = vmatprep.subr.mxu0 0.0
    %81 = vmatpush1.msra.mxu0 0.0
    %82 = vmatprep.subr.mxu0 0.0
    %83 = vmatpush1.msra.mxu0 %v44
    %84 = vmatprep.subr.mxu0 0.0
    %85 = vmatpush1.msra.mxu0 %v43
    %86 = vmatprep.subr.mxu0 0.0
    %87 = vmatpush1.msra.mxu0 %v42
    %88 = vmatprep.subr.mxu0 0.0
    %89 = vmatpush2.msra.mxu0 0.0
    %90 = vmatprep.subr.mxu0 0.0
    %91 = vmatpush2.msra.mxu0 0.0
    %92 = vmatprep.subr.mxu0 0.0
    %93 = vmatpush2.msra.mxu0 0.0
    %94 = vmatprep.subr.mxu0 0.0
    %95 = vmatpush2.msra.mxu0 0.0
    %96 = vmatprep.subr.mxu0 0.0
    %97 = vmatpush2.msra.mxu0 0.0
    %98 = vmatprep.subr.mxu0 0.0
    %99 = vmatpush2.msra.mxu0 0.0
    %100 = vmatprep.subr.mxu0 0.0
    %101 = vmatpush2.msra.mxu0 0.0
    %102 = vmatprep.subr.mxu0 0.0
    %103 = vmatpush2.msra.mxu0 0.0
    %104 = vmatprep.subr.mxu0 0.0
    %105 = vmatpush2.msra.mxu0 0.0
    %106 = vmatprep.subr.mxu0 0.0
    %107 = vmatpush2.msra.mxu0 0.0
    %108 = vmatprep.subr.mxu0 0.0
    %109 = vmatpush2.msra.mxu0 0.0
    %110 = vmatprep.subr.mxu0 0.0
    %111 = vmatpush2.msra.mxu0 0.0
    %112 = vmatprep.subr.mxu0 0.0
    %113 = vmatpush2.msra.mxu0 0.0
    %114 = vmatprep.subr.mxu0 0.0
    %115 = vmatpush2.msra.mxu0 0.0
    %116 = vmatprep.subr.mxu0 0.0
    %117 = vmatpush2.msra.mxu0 0.0
    %118 = vmatprep.subr.mxu0 0.0
    %119 = vmatpush2.msra.mxu0 0.0
    %120 = vmatprep.mubr.f32.mxu0 0.0
    %121 = vmatmul.mubr.f32.gmra.mxu0 %v54
    %v122 = vpop.f32.mrf.mxu0
    %v123 = vadd.f32 %v50, %v122
    %v124 = vpop.f32.mrf.mxu0
    %125 = vdwg.mxu0
    %vm126 = vcmask 254976
    %127 = vst.msk [vmem:[#allocation7] sm:$0x3] %vm126, %v123
    // Predicated region
    $region22: #{tpu_custom_call.1} parent=1 // pred_check
      _
    $region23: #{tpu_custom_call.1} parent=1 // pred_check_branch
      %129 = sbr.rel (0) target = $region25
    $region24: #{tpu_custom_call.1} parent=1 // pred_region
      %s131 = ssub.s32 32, 32
      %132 = vsyncadd [#allocation4], %s131
      %s134 = sshll.u32 [#allocation7], 4
      %s135 = int_to_ptr.vmem [resolvable:$true] %s134
      %137 = dma.vmem_to_hbm [thread:$0]  %s135, 32, %s3, [#allocation4]
    $region25: #{tpu_custom_call.1} parent=1 // pred_fallthru
      _
    // Predicated region
    $region26: #{tpu_custom_call.1} parent=1 // pred_check
      _
    $region27: #{tpu_custom_call.1} parent=1 // pred_check_branch
      %139 = sbr.rel (0) target = $region29
    $region28: #{tpu_custom_call.1} parent=1 // pred_region
      %140 = dma.done [#allocation4], 32
    $region29: #{tpu_custom_call.1} parent=1 // pred_fallthru
      _
    %141 = vsyncpa [#allocation3], 1
    %142 = vsyncpa [#allocation6], 1
    %143 = vsyncpa [#allocation4], 1

</llo_original>
